<compile_context>
chip_gen: v7x
topology: tpu7x:2x2x1
jax: 0.10.0
libtpu: 0.0.40
codegen_flags: <defaults>
</compile_context>

<pallas_src>
import jax
import jax.numpy as jnp
from jax import lax
from jax.experimental import pallas as pl
from jax.experimental.pallas import tpu as pltpu


# ---------------------------------------------------------------------------
# Pallas kernel: 4x (matmul + bias + ReLU) + in-kernel padding mask
# ---------------------------------------------------------------------------
def _framewise_dff_kernel(
    n_wins_ref,  # (B,)       int32 scalar-prefetch (SMEM)
    x_ref,       # (TT, D_in) f32 frame features for this (batch, time) tile
    w1_ref,      # (D_in, HP) bf16, BN folded in
    w2_ref,      # (HP, HP)   bf16
    w3_ref,      # (HP, HP)   bf16
    w4_ref,      # (HP, HP)   bf16
    b_ref,       # (4, HP)    f32 folded biases (row l = layer l+1)
    o_ref,       # (TT, hidden) f32 output (only logical columns)
):
    b = pl.program_id(0)
    j = pl.program_id(1)
    tt = x_ref.shape[0]
    hidden = o_ref.shape[-1]

    def layer(h_bf16, w_ref, row):
        z = jnp.dot(h_bf16, w_ref[...], preferred_element_type=jnp.float32)
        z = z + b_ref[row:row + 1, :]
        return jnp.maximum(z, 0.0)

    # bf16 MXU operands, f32 accumulation; elementwise work stays f32.
    h = layer(x_ref[...].astype(jnp.bfloat16), w1_ref, 0)
    h = layer(h.astype(jnp.bfloat16), w2_ref, 1)
    h = layer(h.astype(jnp.bfloat16), w3_ref, 2)
    h = layer(h.astype(jnp.bfloat16), w4_ref, 3)

    # pad_packed_sequence(padding_value=0.0): zero frames with t >= n_wins[b].
    t = j * tt + lax.broadcasted_iota(jnp.int32, (tt, 1), 0)
    valid = t < n_wins_ref[b]
    o_ref[...] = jnp.where(valid, h[:, :hidden], 0.0).astype(o_ref.dtype)


# ---------------------------------------------------------------------------
# Generation-aware time-tile selection
# ---------------------------------------------------------------------------
def _device_kind():
    try:
        return jax.devices()[0].device_kind.lower()
    except Exception:
        return ""


def _pick_time_tile(t_max, batch, d_in, hidden):
    kind = _device_kind()
    if "v7" in kind:
        target, budget, num_tc = 4096, 24 << 20, 2
    elif "v6" in kind:
        target, budget, num_tc = 2048, 24 << 20, 1
    else:  # v5e / unknown: stay under the 16 MiB scoped-VMEM default
        target, budget, num_tc = 1024, 12 << 20, 1

    # VMEM cap: double-buffered f32 x-tile + f32 out-tile per row.
    per_row = 2 * 4 * (d_in + hidden)
    target = min(target, max(256, (budget // per_row) // 256 * 256))

    if num_tc == 2:
        # Keep >= 2 grid steps per TensorCore when the input is big enough.
        want_t_tiles = max(1, -(-4 // max(1, batch)))
        per_tile = -(-t_max // want_t_tiles)
        if per_tile >= 256:
            target = min(target, ((per_tile + 255) // 256) * 256)

    if t_max <= target:
        return t_max  # full time dim in one block (always layout-legal)
    return target


# ---------------------------------------------------------------------------
# Wrapper: time pre-slice, pallas_call with a (batch, time-tile) grid
# ---------------------------------------------------------------------------
def framewise_forward(x, n_wins, weights_bf16, bias, hidden, t_max=None):
    """NISQA Framewise ('dff', eval mode) forward.

    x: (B, T, 1, seg_len, n_mels) f32; n_wins: (B,) int.
    weights_bf16: dict w1..w4 (BN-folded, hidden padded to 128, bf16);
    bias: (4, HP) f32 folded biases; hidden: logical fc_out_h.
    Returns (B, t_max, hidden) f32, matching the PyTorch module.
    Caller must guarantee t_max >= max(n_wins) (torch: total_length).
    """
    B, T, C, Hh, Ww = x.shape
    d_in = C * Hh * Ww

    if t_max is None:
        # Fallback: mirrors torch `n_wins.max()` (forces a host sync).
        t_max = int(jax.device_get(n_wins).max())
    t_max = min(int(t_max), T)

    # Drop frames t >= t_max before the kernel; keep x in f32 (cast happens
    # in-kernel so x is read from HBM exactly once).
    x3d = x[:, :t_max].reshape(B, t_max, d_in)
    n_wins_i32 = n_wins.astype(jnp.int32)

    tt = _pick_time_tile(t_max, B, d_in, hidden)
    grid = (B, pl.cdiv(t_max, tt))

    full2d = lambda a: pl.BlockSpec(a.shape, lambda b, j, nw: (0, 0))

    out = pl.pallas_call(
        _framewise_dff_kernel,
        out_shape=jax.ShapeDtypeStruct((B, t_max, hidden), jnp.float32),
        grid_spec=pltpu.PrefetchScalarGridSpec(
            num_scalar_prefetch=1,
            grid=grid,
            in_specs=[
                pl.BlockSpec((None, tt, d_in), lambda b, j, nw: (b, j, 0)),
                full2d(weights_bf16["w1"]),
                full2d(weights_bf16["w2"]),
                full2d(weights_bf16["w3"]),
                full2d(weights_bf16["w4"]),
                full2d(bias),
            ],
            out_specs=pl.BlockSpec((None, tt, hidden),
                                   lambda b, j, nw: (b, j, 0)),
        ),
        compiler_params=pltpu.CompilerParams(
            dimension_semantics=("parallel", "parallel")),
    )(
        n_wins_i32, x3d,
        weights_bf16["w1"], weights_bf16["w2"],
        weights_bf16["w3"], weights_bf16["w4"],
        bias,
    )
    return out


# ---------------------------------------------------------------------------
# Raw (PyTorch-style) parameters and one-time fold/pad to kernel form
# ---------------------------------------------------------------------------
def make_raw_params(key, d_in, hidden):
    def bn(k, dim):
        k1, k2, k3, k4 = jax.random.split(k, 4)
        return dict(
            gamma=1.0 + 0.1 * jax.random.normal(k1, (dim,), jnp.float32),
            beta=0.1 * jax.random.normal(k2, (dim,), jnp.float32),
            mean=0.1 * jax.random.normal(k3, (dim,), jnp.float32),
            var=1.0 + 0.1 * jax.random.uniform(k4, (dim,), jnp.float32),
        )

    keys = jax.random.split(key, 9)
    raw = {"bn0": bn(keys[0], d_in)}
    in_dims = [d_in, hidden, hidden, hidden]
    for li in range(4):
        kw, kb = jax.random.split(keys[1 + li], 2)
        w = jax.random.normal(kw, (in_dims[li], hidden), jnp.float32)
        w = w / jnp.sqrt(float(in_dims[li]))
        b = 0.05 * jax.random.normal(kb, (hidden,), jnp.float32)
        raw[f"lin{li + 1}"] = (w, b)
        raw[f"bn{li + 1}"] = bn(keys[5 + li], hidden)
    return raw


def _bn_affine(bn, eps):
    s = bn["gamma"] / jnp.sqrt(bn["var"] + eps)
    return s, bn["beta"] - bn["mean"] * s


def fold_params(raw, eps=1e-5, lane=128):
    """Fold eval-mode BatchNorm + bias into weights; pad hidden dim to 128."""
    w1, b1 = raw["lin1"]
    d_in, hidden = w1.shape
    h_pad = max(lane, ((hidden + lane - 1) // lane) * lane)

    s0, t0 = _bn_affine(raw["bn0"], eps)  # input BN
    s1, t1 = _bn_affine(raw["bn1"], eps)
    ws = [(s0[:, None] * w1) * s1[None, :]]
    bs = [(t0 @ w1 + b1) * s1 + t1]
    for li in range(2, 5):
        w, b = raw[f"lin{li}"]
        s, t = _bn_affine(raw[f"bn{li}"], eps)
        ws.append(w * s[None, :])
        bs.append(b * s + t)

    folded = {"hidden": hidden}
    folded["w1"] = jnp.zeros((d_in, h_pad), jnp.float32).at[:, :hidden].set(ws[0])
    for li in range(2, 5):
        wp = jnp.zeros((h_pad, h_pad), jnp.float32)
        folded[f"w{li}"] = wp.at[:hidden, :hidden].set(ws[li - 1])
    bias = jnp.zeros((4, h_pad), jnp.float32)
    for li in range(4):
        bias = bias.at[li, :hidden].set(bs[li])
    folded["bias"] = bias
    return folded


# ---------------------------------------------------------------------------
# Pure-JAX references for correctness checks
# ---------------------------------------------------------------------------
def raw_forward(x, n_wins, raw, t_max, eps=1e-5):
    """Exact PyTorch eval-mode math (f32 everywhere)."""
    B, T, C, Hh, Ww = x.shape
    h = x.reshape(B * T, C * Hh * Ww).astype(jnp.float32)
    s, t = _bn_affine(raw["bn0"], eps)
    h = h * s + t
    for li in range(1, 5):
        w, b = raw[f"lin{li}"]
        z = h @ w + b
        s, t = _bn_affine(raw[f"bn{li}"], eps)
        h = jnp.maximum(z * s + t, 0.0)
    mask = (jnp.arange(T, dtype=jnp.int32)[None, :] < n_wins[:, None])
    out = h * mask.astype(jnp.float32).reshape(B * T, 1)
    return out.reshape(B, T, -1)[:, :t_max, :]


def folded_forward(x, n_wins, weights, bias, hidden, t_max, *, matmul_dtype):
    """Same math as the kernel, in plain JAX (for a matched comparison)."""
    B, T, C, Hh, Ww = x.shape
    d_in = C * Hh * Ww
    h = x[:, :t_max].reshape(B * t_max, d_in).astype(jnp.float32)
    for li in range(4):
        z = jnp.dot(h.astype(matmul_dtype), weights[li].astype(matmul_dtype),
                    preferred_element_type=jnp.float32) + bias[li]
        h = jnp.maximum(z, 0.0)
    mask = (jnp.arange(t_max, dtype=jnp.int32)[None, :] < n_wins[:, None])
    out = h[:, :hidden] * mask.astype(jnp.float32).reshape(B * t_max, 1)
    return out.reshape(B, t_max, hidden)


if __name__ == "__main__":
    # Small, module-consistent shapes: ms_seg_length=8, ms_n_mels=16,
    # fc_out_h=32, batch=2, max length=8 windows.
    B, T = 2, 8
    SEG, MELS = 8, 16
    D_IN = 1 * SEG * MELS          # 128
    HIDDEN = 32                    # fc_out_h

    key = jax.random.PRNGKey(0)
    kx, kp = jax.random.split(key)
    x = jax.random.normal(kx, (B, T, 1, SEG, MELS), jnp.float32)
    n_wins_host = [8, 5]
    n_wins = jnp.array(n_wins_host, dtype=jnp.int32)
    t_max = max(n_wins_host)       # host-known -> no device sync before slice

    raw = make_raw_params(kp, D_IN, HIDDEN)
    folded = fold_params(raw)                                   # f32, padded
    w_bf16 = {k: folded[k].astype(jnp.bfloat16)
              for k in ("w1", "w2", "w3", "w4")}

    out = framewise_forward(x, n_wins, w_bf16, folded["bias"], HIDDEN, t_max)
    out = jax.block_until_ready(out)

    # Check 1: BN/bias fold + hidden padding is exact (pure f32 algebra).
    ref_raw = raw_forward(x, n_wins, raw, t_max)
    ref_fold = folded_forward(
        x, n_wins, [folded[f"w{i}"] for i in range(1, 5)], folded["bias"],
        HIDDEN, t_max, matmul_dtype=jnp.float32)
    assert jnp.allclose(ref_raw, ref_fold, atol=1e-4, rtol=1e-4), \
        "BN fold mismatch"

    # Check 2: kernel matches an identical bf16-matmul / f32-accumulate path.
    ref_bf16 = folded_forward(
        x, n_wins, [w_bf16[f"w{i}"] for i in range(1, 5)], folded["bias"],
        HIDDEN, t_max, matmul_dtype=jnp.bfloat16)
    assert out.shape == ref_bf16.shape == (B, t_max, HIDDEN), out.shape
    assert jnp.allclose(out, ref_bf16, atol=2e-3, rtol=2e-3), \
        "kernel mismatch vs bf16 reference"

    print("KERNEL_OK")
</pallas_src>

<mosaic_0001>
module attributes {stable_mosaic.version = 11 : i64} {
  func.func @_framewise_dff_kernel(%arg0: i32, %arg1: i32, %arg2: memref<2xi32, #tpu.memory_space<smem>>, %arg3: memref<1x8x128xf32, #tpu.memory_space<vmem>>, %arg4: memref<128x128xbf16, #tpu.memory_space<vmem>>, %arg5: memref<128x128xbf16, #tpu.memory_space<vmem>>, %arg6: memref<128x128xbf16, #tpu.memory_space<vmem>>, %arg7: memref<128x128xbf16, #tpu.memory_space<vmem>>, %arg8: memref<4x128xf32, #tpu.memory_space<vmem>>, %arg9: memref<1x8x32xf32, #tpu.memory_space<vmem>>) attributes {dimension_semantics = [#tpu.dimension_semantics<parallel>, #tpu.dimension_semantics<parallel>], iteration_bounds = array<i64: 2, 1>, scalar_prefetch = 1 : i64, scratch_operands = 0 : i64, tpu.core_type = #tpu.core_type<tc>, window_params = [{transform_indices = @transform_0, window_bounds = array<i64: 1, 8, 128>}, {pipeline_mode = #tpu.pipeline_mode<synchronous>, transform_indices = @transform_1, window_bounds = array<i64: 128, 128>}, {pipeline_mode = #tpu.pipeline_mode<synchronous>, transform_indices = @transform_2, window_bounds = array<i64: 128, 128>}, {pipeline_mode = #tpu.pipeline_mode<synchronous>, transform_indices = @transform_3, window_bounds = array<i64: 128, 128>}, {pipeline_mode = #tpu.pipeline_mode<synchronous>, transform_indices = @transform_4, window_bounds = array<i64: 128, 128>}, {pipeline_mode = #tpu.pipeline_mode<synchronous>, transform_indices = @transform_5, window_bounds = array<i64: 4, 128>}, {transform_indices = @transform_6, window_bounds = array<i64: 1, 8, 32>}]} {
    %c0 = arith.constant 0 : index
    %c0_0 = arith.constant 0 : index
    %c0_1 = arith.constant 0 : index
    %0 = vector.load %arg3[%c0, %c0_0, %c0_1] : memref<1x8x128xf32, #tpu.memory_space<vmem>>, vector<1x8x128xf32>
    %1 = vector.shape_cast %0 : vector<1x8x128xf32> to vector<8x128xf32>
    %2 = arith.truncf %1 : vector<8x128xf32> to vector<8x128xbf16>
    %c0_2 = arith.constant 0 : index
    %c0_3 = arith.constant 0 : index
    %3 = vector.load %arg4[%c0_2, %c0_3] : memref<128x128xbf16, #tpu.memory_space<vmem>>, vector<128x128xbf16>
    %cst = arith.constant dense<0.000000e+00> : vector<8x128xf32>
    %4 = tpu.matmul %2, %3, %cst {dimension_numbers = #tpu.dot_dimension_numbers<[1], [0], [0], [1], [0, 0, 1, 1], [], []>} : vector<8x128xbf16>, vector<128x128xbf16>, vector<8x128xf32> -> vector<8x128xf32>
    %c0_4 = arith.constant 0 : index
    %c0_5 = arith.constant 0 : index
    %5 = vector.load %arg8[%c0_4, %c0_5] : memref<4x128xf32, #tpu.memory_space<vmem>>, vector<1x128xf32>
    %6 = vector.broadcast %5 : vector<1x128xf32> to vector<8x128xf32>
    %7 = arith.addf %4, %6 : vector<8x128xf32>
    %cst_6 = arith.constant 0.000000e+00 : f32
    %8 = vector.broadcast %cst_6 : f32 to vector<8x128xf32>
    %9 = arith.maximumf %7, %8 : vector<8x128xf32>
    %10 = arith.truncf %9 : vector<8x128xf32> to vector<8x128xbf16>
    %c0_7 = arith.constant 0 : index
    %c0_8 = arith.constant 0 : index
    %11 = vector.load %arg5[%c0_7, %c0_8] : memref<128x128xbf16, #tpu.memory_space<vmem>>, vector<128x128xbf16>
    %cst_9 = arith.constant dense<0.000000e+00> : vector<8x128xf32>
    %12 = tpu.matmul %10, %11, %cst_9 {dimension_numbers = #tpu.dot_dimension_numbers<[1], [0], [0], [1], [0, 0, 1, 1], [], []>} : vector<8x128xbf16>, vector<128x128xbf16>, vector<8x128xf32> -> vector<8x128xf32>
    %c1 = arith.constant 1 : index
    %c0_10 = arith.constant 0 : index
    %13 = vector.load %arg8[%c1, %c0_10] : memref<4x128xf32, #tpu.memory_space<vmem>>, vector<1x128xf32>
    %14 = vector.broadcast %13 : vector<1x128xf32> to vector<8x128xf32>
    %15 = arith.addf %12, %14 : vector<8x128xf32>
    %cst_11 = arith.constant 0.000000e+00 : f32
    %16 = vector.broadcast %cst_11 : f32 to vector<8x128xf32>
    %17 = arith.maximumf %15, %16 : vector<8x128xf32>
    %18 = arith.truncf %17 : vector<8x128xf32> to vector<8x128xbf16>
    %c0_12 = arith.constant 0 : index
    %c0_13 = arith.constant 0 : index
    %19 = vector.load %arg6[%c0_12, %c0_13] : memref<128x128xbf16, #tpu.memory_space<vmem>>, vector<128x128xbf16>
    %cst_14 = arith.constant dense<0.000000e+00> : vector<8x128xf32>
    %20 = tpu.matmul %18, %19, %cst_14 {dimension_numbers = #tpu.dot_dimension_numbers<[1], [0], [0], [1], [0, 0, 1, 1], [], []>} : vector<8x128xbf16>, vector<128x128xbf16>, vector<8x128xf32> -> vector<8x128xf32>
    %c2 = arith.constant 2 : index
    %c0_15 = arith.constant 0 : index
    %21 = vector.load %arg8[%c2, %c0_15] : memref<4x128xf32, #tpu.memory_space<vmem>>, vector<1x128xf32>
    %22 = vector.broadcast %21 : vector<1x128xf32> to vector<8x128xf32>
    %23 = arith.addf %20, %22 : vector<8x128xf32>
    %cst_16 = arith.constant 0.000000e+00 : f32
    %24 = vector.broadcast %cst_16 : f32 to vector<8x128xf32>
    %25 = arith.maximumf %23, %24 : vector<8x128xf32>
    %26 = arith.truncf %25 : vector<8x128xf32> to vector<8x128xbf16>
    %c0_17 = arith.constant 0 : index
    %c0_18 = arith.constant 0 : index
    %27 = vector.load %arg7[%c0_17, %c0_18] : memref<128x128xbf16, #tpu.memory_space<vmem>>, vector<128x128xbf16>
    %cst_19 = arith.constant dense<0.000000e+00> : vector<8x128xf32>
    %28 = tpu.matmul %26, %27, %cst_19 {dimension_numbers = #tpu.dot_dimension_numbers<[1], [0], [0], [1], [0, 0, 1, 1], [], []>} : vector<8x128xbf16>, vector<128x128xbf16>, vector<8x128xf32> -> vector<8x128xf32>
    %c3 = arith.constant 3 : index
    %c0_20 = arith.constant 0 : index
    %29 = vector.load %arg8[%c3, %c0_20] : memref<4x128xf32, #tpu.memory_space<vmem>>, vector<1x128xf32>
    %30 = vector.broadcast %29 : vector<1x128xf32> to vector<8x128xf32>
    %31 = arith.addf %28, %30 : vector<8x128xf32>
    %cst_21 = arith.constant 0.000000e+00 : f32
    %32 = vector.broadcast %cst_21 : f32 to vector<8x128xf32>
    %33 = arith.maximumf %31, %32 : vector<8x128xf32>
    %c8_i32 = arith.constant 8 : i32
    %34 = arith.muli %arg1, %c8_i32 : i32
    %35 = tpu.iota {dimensions = array<i32: 0>} : vector<8x1xi32>
    %36 = vector.broadcast %34 : i32 to vector<8x1xi32>
    %37 = arith.addi %36, %35 : vector<8x1xi32>
    %38 = arith.index_cast %arg0 : i32 to index
    %39 = memref.load %arg2[%38] : memref<2xi32, #tpu.memory_space<smem>>
    %40 = vector.broadcast %39 : i32 to vector<8x1xi32>
    %41 = arith.cmpi slt, %37, %40 : vector<8x1xi32>
    %42 = vector.extract_strided_slice %33 {offsets = [0, 0], sizes = [8, 32], strides = [1, 1]} : vector<8x128xf32> to vector<8x32xf32>
    %cst_22 = arith.constant 0.000000e+00 : f32
    %43 = vector.shape_cast %41 : vector<8x1xi1> to vector<8x1xi1>
    %44 = vector.broadcast %43 : vector<8x1xi1> to vector<8x32xi1>
    %45 = vector.broadcast %cst_22 : f32 to vector<8x32xf32>
    %46 = arith.select %44, %42, %45 : vector<8x32xi1>, vector<8x32xf32>
    %c0_23 = arith.constant 0 : index
    %c0_24 = arith.constant 0 : index
    %c0_25 = arith.constant 0 : index
    %47 = vector.load %arg9[%c0_23, %c0_24, %c0_25] : memref<1x8x32xf32, #tpu.memory_space<vmem>>, vector<1x8x32xf32>
    %48 = vector.shape_cast %47 : vector<1x8x32xf32> to vector<8x32xf32>
    %49 = vector.shape_cast %46 : vector<8x32xf32> to vector<1x8x32xf32>
    tpu.vector_store %arg9[%c0_23, %c0_24, %c0_25], %49 {strides = array<i32>} : memref<1x8x32xf32, #tpu.memory_space<vmem>>, vector<1x8x32xf32>,
    return
  }
  func.func @transform_0(%arg0: i32, %arg1: i32, %arg2: memref<2xi32, #tpu.memory_space<smem>>) -> (i32, i32, i32) {
    %c0_i32 = arith.constant 0 : i32
    %c0_i32_0 = arith.constant 0 : i32
    return %arg0, %arg1, %c0_i32 : i32, i32, i32
  }
  func.func @transform_1(%arg0: i32, %arg1: i32, %arg2: memref<2xi32, #tpu.memory_space<smem>>) -> (i32, i32) {
    %c0_i32 = arith.constant 0 : i32
    %c0_i32_0 = arith.constant 0 : i32
    %c0_i32_1 = arith.constant 0 : i32
    return %c0_i32, %c0_i32_0 : i32, i32
  }
  func.func @transform_2(%arg0: i32, %arg1: i32, %arg2: memref<2xi32, #tpu.memory_space<smem>>) -> (i32, i32) {
    %c0_i32 = arith.constant 0 : i32
    %c0_i32_0 = arith.constant 0 : i32
    %c0_i32_1 = arith.constant 0 : i32
    return %c0_i32, %c0_i32_0 : i32, i32
  }
  func.func @transform_3(%arg0: i32, %arg1: i32, %arg2: memref<2xi32, #tpu.memory_space<smem>>) -> (i32, i32) {
    %c0_i32 = arith.constant 0 : i32
    %c0_i32_0 = arith.constant 0 : i32
    %c0_i32_1 = arith.constant 0 : i32
    return %c0_i32, %c0_i32_0 : i32, i32
  }
  func.func @transform_4(%arg0: i32, %arg1: i32, %arg2: memref<2xi32, #tpu.memory_space<smem>>) -> (i32, i32) {
    %c0_i32 = arith.constant 0 : i32
    %c0_i32_0 = arith.constant 0 : i32
    %c0_i32_1 = arith.constant 0 : i32
    return %c0_i32, %c0_i32_0 : i32, i32
  }
  func.func @transform_5(%arg0: i32, %arg1: i32, %arg2: memref<2xi32, #tpu.memory_space<smem>>) -> (i32, i32) {
    %c0_i32 = arith.constant 0 : i32
    %c0_i32_0 = arith.constant 0 : i32
    %c0_i32_1 = arith.constant 0 : i32
    return %c0_i32, %c0_i32_0 : i32, i32
  }
  func.func @transform_6(%arg0: i32, %arg1: i32, %arg2: memref<2xi32, #tpu.memory_space<smem>>) -> (i32, i32, i32) {
    %c0_i32 = arith.constant 0 : i32
    %c0_i32_0 = arith.constant 0 : i32
    return %arg0, %arg1, %c0_i32 : i32, i32, i32
  }
}

</mosaic_0001>

<llo_original>
// kernel: tpu_custom_call.1
$region0: #{tpu_custom_call.1}
  #allocation0 [shape = 'u32[]', space=smem, size = 0x4, offset = 0x4, fixed_abs, tag = 'smem constant byte address 0x4 - core index']
  #allocation1 [shape = 'u32[144,128]{1,0:T(1,128)}', space=vmem, size = 0x12000, scoped, tag = 'internal scratch']
  #allocation2 [shape = 's32[1]{0}', space=sflag, size = 0x4, scoped, tag = 'scoped memory for tpu_custom_call.1']
  #allocation3 [shape = 'u8[512]{0}', space=smem, size = 0x200, scoped, tag = 'prefetched SMEM operand 0']
  %s0 = inlined_call_operand.hbm [shape: s32[2], index: 0, kind: input, shape index: {}]
  %s1 = inlined_call_operand.hbm [shape: f32[2,8,128], index: 1, kind: input, shape index: {}]
  %s2 = inlined_call_operand.hbm [shape: bf16[128,128], index: 2, kind: input, shape index: {}]
  %s3 = inlined_call_operand.hbm [shape: bf16[128,128], index: 3, kind: input, shape index: {}]
  %s4 = inlined_call_operand.hbm [shape: bf16[128,128], index: 4, kind: input, shape index: {}]
  %s5 = inlined_call_operand.hbm [shape: bf16[128,128], index: 5, kind: input, shape index: {}]
  %s6 = inlined_call_operand.vmem [shape: f32[4,128], index: 6, kind: input, shape index: {}]
  %s7 = inlined_call_operand.hbm [shape: f32[2,8,32], index: 7, kind: output, shape index: {}]
  %s8 = sld [smem:[#allocation0]]
  $region77: #{tpu_custom_call.1} parent=0
    _
  %s10 = ssub.s32 1, %s8
  %s11 = scalar_select 0, %s10, %s8
  %13 = dma.hbm_to_smem %s0, 16, [#allocation3], [#allocation2]
  %14 = dma.done [#allocation2], 16
  %15 = sfence
  $region1: #{tpu_custom_call.1} parent=0
    #allocation4 [shape = 'u8[8192]{0}', space=vmem, size = 0x2000, scoped, tag = 'input window, operand 1']
    #allocation5 [shape = 's32[2]{0}', space=sflag, size = 0x8, scoped, tag = 'scoped memory for tpu_custom_call.1']
    #allocation6 [shape = 's32[2]{0}', space=sflag, size = 0x8, scoped, tag = 'scoped memory for tpu_custom_call.1']
    #allocation7 [shape = 'u8[32768]{0}', space=vmem, size = 0x8000, scoped, tag = 'input window, operand 2, single buffered']
    #allocation8 [shape = 's32[1]{0}', space=sflag, size = 0x4, scoped, tag = 'scoped memory for tpu_custom_call.1']
    #allocation9 [shape = 'u8[32768]{0}', space=vmem, size = 0x8000, scoped, tag = 'input window, operand 3, single buffered']
    #allocation10 [shape = 'u8[32768]{0}', space=vmem, size = 0x8000, scoped, tag = 'input window, operand 4, single buffered']
    #allocation11 [shape = 's32[1]{0}', space=sflag, size = 0x4, scoped, tag = 'scoped memory for tpu_custom_call.1']
    #allocation12 [shape = 'u8[32768]{0}', space=vmem, size = 0x8000, scoped, tag = 'input window, operand 5, single buffered']
    #allocation13 [shape = 'u8[8192]{0}', space=vmem, size = 0x2000, scoped, tag = 'output window, operand 0']
    %16 = vsyncpa [#allocation5], 0
    %s17 = scalar_lea.sflag [#allocation5], 1
    %18 = vsyncpa %s17, 0
    %19 = vsyncpa [#allocation8], 0
    %20 = vsyncpa [#allocation11], 0
    %21 = vsyncpa [#allocation6], 0
    %s22 = scalar_lea.sflag [#allocation6], 1
    %23 = vsyncpa %s22, 0
    loop: start=0, step=1, limit=4
    $region2: #{tpu_custom_call.1} parent=1 // loop_pre_header
      _
    $region3: #{tpu_custom_call.1} parent=1 // loop_header
      %s25 = sphi 0, %s29
      %p26 = scmp.ge.s32.totalorder %s25, 4
      %s32 = sphi 0, %s44
      %s33 = sphi 0, %s40
      %s34 = sphi 0, %s32
      %s35 = sphi 0, %s33
      %s36 = sphi 0, %s34
      %s37 = sphi 0, %s35
      %s49 = sphi 0, %s51
      %s52 = sphi 0, %s49
      %s53 = sphi 0, %s52
      %s69 = sphi 0, %s53
      %s73 = sphi 0, %s73
      %s75 = sphi 0, %s73
      %s76 = sphi 0, %s75
      %s90 = sphi 0, %s76
      %s94 = sphi 0, %s94
      %s96 = sphi 0, %s94
      %s97 = sphi 0, %s96
      %s111 = sphi 0, %s97
      %s115 = sphi 0, %s115
      %s117 = sphi 0, %s115
      %s118 = sphi 0, %s117
      %s132 = sphi 0, %s118
      %s136 = sphi 0, %s136
      %s138 = sphi 0, %s136
      %s139 = sphi 0, %s138
      %s153 = sphi 0, %s139
      %s157 = sphi 0, %s157
      %s159 = sphi 0, %s157
      %s160 = sphi 0, %s159
      %s174 = sphi 0, %s160
      %s182 = sphi 0, %s184
      %s185 = sphi 0, %s182
      %s186 = sphi 0, %s185
      %s202 = sphi 0, %s186
    $region4: #{tpu_custom_call.1} parent=1 // loop_header_branch
      %28 = sbr.rel (%p26) target = $region8
    $region5: #{tpu_custom_call.1} parent=1 // loop_body
      %s30 = ssub.s32 %s25, 1
      %s31 = ssub.s32 %s25, 2
      %s38 = sadd.s32 1, %s33
      %p39 = scmp.ge.s32.totalorder %s38, 1
      %s40 = scalar_select %p39, 0, %s38
      %s41 = sadd.s32 1, %s32
      %s42 = scalar_select %p39, %s41, %s32
      %p43 = scmp.ge.s32.totalorder %s42, 2
      %s44 = scalar_select %p43, 0, %s42
      %s45 = ssub.s32 %s32, %s44
      %s46 = ssub.s32 %s33, %s40
      %s47 = sor.u32 %s45, %s46
      %p48 = scmp.eq.s32.totalorder %s47, 0
      %s50 = sadd.s32 %s49, 1
      %s51 = scalar_select %p48, %s49, %s50
      %p54 = pneg %p48
      %p55 = scmp.eq.s32.totalorder %s25, 1
      %p56 = por %p54, %p55
      %p57 = scmp.ne.s32.totalorder %s49, %s52
      %p58 = scmp.eq.s32.totalorder %s25, 0
      %p59 = por %p57, %p58
      %p60 = scmp.ne.s32.totalorder %s49, %s52
      %p61 = scmp.eq.s32.totalorder %s30, 1
      %p62 = por %p60, %p61
      %p63 = scmp.ne.s32.totalorder %s52, %s53
      %p64 = scmp.eq.s32.totalorder %s30, 0
      %p65 = por %p63, %p64
      %p66 = scmp.ne.s32.totalorder %s52, %s53
      %p67 = scmp.eq.s32.totalorder %s31, 1
      %p68 = por %p66, %p67
      %p70 = scmp.ne.s32.totalorder %s53, %s69
      %p71 = scmp.eq.s32.totalorder %s31, 0
      %p72 = por %p70, %p71
      %s74 = sadd.s32 %s73, 1
      %p77 = scmp.eq.s32.totalorder %s25, 1
      %p78 = scmp.ne.s32.totalorder %s73, %s75
      %p79 = scmp.eq.s32.totalorder %s25, 0
      %p80 = por %p78, %p79
      %p81 = scmp.ne.s32.totalorder %s73, %s75
      %p82 = scmp.eq.s32.totalorder %s30, 1
      %p83 = por %p81, %p82
      %p84 = scmp.ne.s32.totalorder %s75, %s76
      %p85 = scmp.eq.s32.totalorder %s30, 0
      %p86 = por %p84, %p85
      %p87 = scmp.ne.s32.totalorder %s75, %s76
      %p88 = scmp.eq.s32.totalorder %s31, 1
      %p89 = por %p87, %p88
      %p91 = scmp.ne.s32.totalorder %s76, %s90
      %p92 = scmp.eq.s32.totalorder %s31, 0
      %p93 = por %p91, %p92
      %s95 = sadd.s32 %s94, 1
      %p98 = scmp.eq.s32.totalorder %s25, 1
      %p99 = scmp.ne.s32.totalorder %s94, %s96
      %p100 = scmp.eq.s32.totalorder %s25, 0
      %p101 = por %p99, %p100
      %p102 = scmp.ne.s32.totalorder %s94, %s96
      %p103 = scmp.eq.s32.totalorder %s30, 1
      %p104 = por %p102, %p103
      %p105 = scmp.ne.s32.totalorder %s96, %s97
      %p106 = scmp.eq.s32.totalorder %s30, 0
      %p107 = por %p105, %p106
      %p108 = scmp.ne.s32.totalorder %s96, %s97
      %p109 = scmp.eq.s32.totalorder %s31, 1
      %p110 = por %p108, %p109
      %p112 = scmp.ne.s32.totalorder %s97, %s111
      %p113 = scmp.eq.s32.totalorder %s31, 0
      %p114 = por %p112, %p113
      %s116 = sadd.s32 %s115, 1
      %p119 = scmp.eq.s32.totalorder %s25, 1
      %p120 = scmp.ne.s32.totalorder %s115, %s117
      %p121 = scmp.eq.s32.totalorder %s25, 0
      %p122 = por %p120, %p121
      %p123 = scmp.ne.s32.totalorder %s115, %s117
      %p124 = scmp.eq.s32.totalorder %s30, 1
      %p125 = por %p123, %p124
      %p126 = scmp.ne.s32.totalorder %s117, %s118
      %p127 = scmp.eq.s32.totalorder %s30, 0
      %p128 = por %p126, %p127
      %p129 = scmp.ne.s32.totalorder %s117, %s118
      %p130 = scmp.eq.s32.totalorder %s31, 1
      %p131 = por %p129, %p130
      %p133 = scmp.ne.s32.totalorder %s118, %s132
      %p134 = scmp.eq.s32.totalorder %s31, 0
      %p135 = por %p133, %p134
      %s137 = sadd.s32 %s136, 1
      %p140 = scmp.eq.s32.totalorder %s25, 1
      %p141 = scmp.ne.s32.totalorder %s136, %s138
      %p142 = scmp.eq.s32.totalorder %s25, 0
      %p143 = por %p141, %p142
      %p144 = scmp.ne.s32.totalorder %s136, %s138
      %p145 = scmp.eq.s32.totalorder %s30, 1
      %p146 = por %p144, %p145
      %p147 = scmp.ne.s32.totalorder %s138, %s139
      %p148 = scmp.eq.s32.totalorder %s30, 0
      %p149 = por %p147, %p148
      %p150 = scmp.ne.s32.totalorder %s138, %s139
      %p151 = scmp.eq.s32.totalorder %s31, 1
      %p152 = por %p150, %p151
      %p154 = scmp.ne.s32.totalorder %s139, %s153
      %p155 = scmp.eq.s32.totalorder %s31, 0
      %p156 = por %p154, %p155
      %s158 = sadd.s32 %s157, 1
      %p161 = scmp.eq.s32.totalorder %s25, 1
      %p162 = scmp.ne.s32.totalorder %s157, %s159
      %p163 = scmp.eq.s32.totalorder %s25, 0
      %p164 = por %p162, %p163
      %p165 = scmp.ne.s32.totalorder %s157, %s159
      %p166 = scmp.eq.s32.totalorder %s30, 1
      %p167 = por %p165, %p166
      %p168 = scmp.ne.s32.totalorder %s159, %s160
      %p169 = scmp.eq.s32.totalorder %s30, 0
      %p170 = por %p168, %p169
      %p171 = scmp.ne.s32.totalorder %s159, %s160
      %p172 = scmp.eq.s32.totalorder %s31, 1
      %p173 = por %p171, %p172
      %p175 = scmp.ne.s32.totalorder %s160, %s174
      %p176 = scmp.eq.s32.totalorder %s31, 0
      %p177 = por %p175, %p176
      %s178 = ssub.s32 %s32, %s44
      %s179 = ssub.s32 %s33, %s40
      %s180 = sor.u32 %s178, %s179
      %p181 = scmp.eq.s32.totalorder %s180, 0
      %s183 = sadd.s32 %s182, 1
      %s184 = scalar_select %p181, %s182, %s183
      %p187 = pneg %p181
      %p188 = scmp.eq.s32.totalorder %s25, 1
      %p189 = por %p187, %p188
      %p190 = scmp.ne.s32.totalorder %s182, %s185
      %p191 = scmp.eq.s32.totalorder %s25, 0
      %p192 = por %p190, %p191
      %p193 = scmp.ne.s32.totalorder %s182, %s185
      %p194 = scmp.eq.s32.totalorder %s30, 1
      %p195 = por %p193, %p194
      %p196 = scmp.ne.s32.totalorder %s185, %s186
      %p197 = scmp.eq.s32.totalorder %s30, 0
      %p198 = por %p196, %p197
      %p199 = scmp.ne.s32.totalorder %s185, %s186
      %p200 = scmp.eq.s32.totalorder %s31, 1
      %p201 = por %p199, %p200
      %p203 = scmp.ne.s32.totalorder %s186, %s202
      %p204 = scmp.eq.s32.totalorder %s31, 0
      %p205 = por %p203, %p204
      %p206 = scmp.le.s32.totalorder 1, %s25
      %p207 = scmp.lt.s32.totalorder %s25, 3
      %p208 = pnand %p206, %p207
      %p209 = pneg %p208
      // Predicated region
      $region9: #{tpu_custom_call.1} parent=5 // pred_check
        _
      $region10: #{tpu_custom_call.1} parent=5 // pred_check_branch
        %211 = sbr.rel (%p208) target = $region12
      $region11: #{tpu_custom_call.1} parent=5 // pred_region
        %s212 = ssub.s32 %s25, 1
        // Predicated region
        $region13: #{tpu_custom_call.1} parent=11 // pred_check
          %p213 = pneg %p86
        $region14: #{tpu_custom_call.1} parent=11 // pred_check_branch
          %215 = sbr.rel (%p213) target = $region16
        $region15: #{tpu_custom_call.1} parent=11 // pred_region
          %s217 = ssub.s32 1024, 1024
          %218 = vsyncadd [#allocation8], %s217
          %s219 = sshll.u32 [#allocation7], 4
          %s220 = int_to_ptr.vmem [resolvable:$true] %s219
          %225 = dma.hbm_to_vmem [thread:$0]  %s2, 1024, %s220, [#allocation8], 64, 64, 4
        $region16: #{tpu_custom_call.1} parent=11 // pred_fallthru
          _
        // Predicated region
        $region17: #{tpu_custom_call.1} parent=11 // pred_check
          %p226 = pneg %p107
        $region18: #{tpu_custom_call.1} parent=11 // pred_check_branch
          %228 = sbr.rel (%p226) target = $region20
        $region19: #{tpu_custom_call.1} parent=11 // pred_region
          %s230 = ssub.s32 1024, 1024
          %231 = vsyncadd [#allocation8], %s230
          %s232 = sshll.u32 [#allocation9], 4
          %s233 = int_to_ptr.vmem [resolvable:$true] %s232
          %238 = dma.hbm_to_vmem [thread:$0]  %s3, 1024, %s233, [#allocation8], 64, 64, 4
        $region20: #{tpu_custom_call.1} parent=11 // pred_fallthru
          _
        // Predicated region
        $region21: #{tpu_custom_call.1} parent=11 // pred_check
          %p239 = pneg %p128
        $region22: #{tpu_custom_call.1} parent=11 // pred_check_branch
          %241 = sbr.rel (%p239) target = $region24
        $region23: #{tpu_custom_call.1} parent=11 // pred_region
          %s243 = ssub.s32 1024, 1024
          %244 = vsyncadd [#allocation11], %s243
          %s245 = sshll.u32 [#allocation10], 4
          %s246 = int_to_ptr.vmem [resolvable:$true] %s245
          %251 = dma.hbm_to_vmem [thread:$0]  %s4, 1024, %s246, [#allocation11], 64, 64, 4
        $region24: #{tpu_custom_call.1} parent=11 // pred_fallthru
          _
        // Predicated region
        $region25: #{tpu_custom_call.1} parent=11 // pred_check
          %p252 = pneg %p149
        $region26: #{tpu_custom_call.1} parent=11 // pred_check_branch
          %254 = sbr.rel (%p252) target = $region28
        $region27: #{tpu_custom_call.1} parent=11 // pred_region
          %s256 = ssub.s32 1024, 1024
          %257 = vsyncadd [#allocation11], %s256
          %s258 = sshll.u32 [#allocation12], 4
          %s259 = int_to_ptr.vmem [resolvable:$true] %s258
          %264 = dma.hbm_to_vmem [thread:$0]  %s5, 1024, %s259, [#allocation11], 64, 64, 4
        $region28: #{tpu_custom_call.1} parent=11 // pred_fallthru
          _
        // Predicated region
        $region29: #{tpu_custom_call.1} parent=11 // pred_check
          %p265 = pneg %p170
        $region30: #{tpu_custom_call.1} parent=11 // pred_check_branch
          %267 = sbr.rel (%p265) target = $region32
        $region31: #{tpu_custom_call.1} parent=11 // pred_region
          _
        $region32: #{tpu_custom_call.1} parent=11 // pred_fallthru
          _
      $region12: #{tpu_custom_call.1} parent=5 // pred_fallthru
        _
      %p268 = scmp.lt.s32.totalorder %s25, 2
      // Predicated region
      $region33: #{tpu_custom_call.1} parent=5 // pred_check
        %p269 = pneg %p268
      $region34: #{tpu_custom_call.1} parent=5 // pred_check_branch
        %271 = sbr.rel (%p269) target = $region36
      $region35: #{tpu_custom_call.1} parent=5 // pred_region
        // Predicated region
        $region37: #{tpu_custom_call.1} parent=35 // pred_check
          %p272 = pneg %p59
        $region38: #{tpu_custom_call.1} parent=35 // pred_check_branch
          %274 = sbr.rel (%p272) target = $region40
        $region39: #{tpu_custom_call.1} parent=35 // pred_region
          %s275 = sand.u32 %s49, 1
          %s276 = scalar_lea.sflag [#allocation5], %s275
          %s277 = sand.u32 %s49, 1
          %s278 = smul.addr %s277, 8
          %s279 = scalar_lea.vmem [#allocation4], %s278
          %s281 = ssub.s32 128, 128
          %282 = vsyncadd %s276, %s281
          %s283 = sadd.s32 %s33, %s32
          %s284 = smul.addr %s283, 128
          %s285 = scalar_lea.hbm %s1, %s284
          %s287 = sshll.u32 %s279, 4
          %s288 = int_to_ptr.vmem [resolvable:$true] %s287
          %290 = dma.hbm_to_vmem [thread:$0]  %s285, 128, %s288, %s276
        $region40: #{tpu_custom_call.1} parent=35 // pred_fallthru
          _
      $region36: #{tpu_custom_call.1} parent=5 // pred_fallthru
        _
      %p291 = scmp.le.s32.totalorder 1, %s25
      %p292 = scmp.lt.s32.totalorder %s25, 3
      %p293 = pnand %p291, %p292
      %p294 = pneg %p293
      // Predicated region
      $region41: #{tpu_custom_call.1} parent=5 // pred_check
        _
      $region42: #{tpu_custom_call.1} parent=5 // pred_check_branch
        %296 = sbr.rel (%p293) target = $region44
      $region43: #{tpu_custom_call.1} parent=5 // pred_region
        %s297 = ssub.s32 %s25, 1
        %s298 = sand.u32 %s52, 1
        %s299 = scalar_lea.sflag [#allocation5], %s298
        %s300 = sand.u32 %s52, 1
        %s301 = smul.addr %s300, 8
        %s302 = scalar_lea.vmem [#allocation4], %s301
        // Predicated region
        $region45: #{tpu_custom_call.1} parent=43 // pred_check
          %p303 = pneg %p65
        $region46: #{tpu_custom_call.1} parent=43 // pred_check_branch
          %305 = sbr.rel (%p303) target = $region48
        $region47: #{tpu_custom_call.1} parent=43 // pred_region
          %306 = dma.done %s299, 128
        $region48: #{tpu_custom_call.1} parent=43 // pred_fallthru
          _
        // Predicated region
        $region49: #{tpu_custom_call.1} parent=43 // pred_check
          %p307 = pneg %p86
        $region50: #{tpu_custom_call.1} parent=43 // pred_check_branch
          %309 = sbr.rel (%p307) target = $region52
        $region51: #{tpu_custom_call.1} parent=43 // pred_region
          %310 = dma.done [#allocation8], 1024
        $region52: #{tpu_custom_call.1} parent=43 // pred_fallthru
          _
        // Predicated region
        $region53: #{tpu_custom_call.1} parent=43 // pred_check
          %p311 = pneg %p107
        $region54: #{tpu_custom_call.1} parent=43 // pred_check_branch
          %313 = sbr.rel (%p311) target = $region56
        $region55: #{tpu_custom_call.1} parent=43 // pred_region
          %314 = dma.done [#allocation8], 1024
        $region56: #{tpu_custom_call.1} parent=43 // pred_fallthru
          _
        // Predicated region
        $region57: #{tpu_custom_call.1} parent=43 // pred_check
          %p315 = pneg %p128
        $region58: #{tpu_custom_call.1} parent=43 // pred_check_branch
          %317 = sbr.rel (%p315) target = $region60
        $region59: #{tpu_custom_call.1} parent=43 // pred_region
          %318 = dma.done [#allocation11], 1024
        $region60: #{tpu_custom_call.1} parent=43 // pred_fallthru
          _
        // Predicated region
        $region61: #{tpu_custom_call.1} parent=43 // pred_check
          %p319 = pneg %p149
        $region62: #{tpu_custom_call.1} parent=43 // pred_check_branch
          %321 = sbr.rel (%p319) target = $region64
        $region63: #{tpu_custom_call.1} parent=43 // pred_region
          %322 = dma.done [#allocation11], 1024
        $region64: #{tpu_custom_call.1} parent=43 // pred_fallthru
          _
        %s323 = sand.u32 %s52, 1
        %s324 = scalar_lea.sflag [#allocation5], %s323
        %s325 = sand.u32 %s52, 1
        %s326 = smul.addr %s325, 8
        %s327 = scalar_lea.vmem [#allocation4], %s326
        %p328 = pneg %p65
        %p329 = pneg %p62
        %p330 = pneg %p86
        %p331 = pneg %p83
        %p332 = pneg %p107
        %p333 = pneg %p104
        %p334 = pneg %p128
        %p335 = pneg %p125
        %p336 = pneg %p149
        %p337 = pneg %p146
        %p338 = pneg %p170
        %p339 = pneg %p167
        %p340 = pneg %p198
        %p341 = pneg %p195
        %s342 = sand.u32 %s185, 1
        %s343 = scalar_lea.sflag [#allocation6], %s342
        %s344 = sand.u32 %s185, 1
        %s345 = smul.addr %s344, 8
        %s346 = scalar_lea.vmem [#allocation13], %s345
        %v348 = vld [vmem:[%s302] sm:$0xff]
        %v349 = vpack.c.bf16 %v348, %v348
        %v350 = vld [vmem:[#allocation7] sm:$0xf]
        %v351 = vld [vmem:[#allocation7 + $0x4] sm:$0xf]
        %v352 = vld [vmem:[#allocation7 + $0x8] sm:$0xf]
        %v353 = vld [vmem:[#allocation7 + $0xc] sm:$0xf]
        %v354 = vld [vmem:[#allocation7 + $0x10] sm:$0xf]
        %v355 = vld [vmem:[#allocation7 + $0x14] sm:$0xf]
        %v356 = vld [vmem:[#allocation7 + $0x18] sm:$0xf]
        %v357 = vld [vmem:[#allocation7 + $0x1c] sm:$0xf]
        %v358 = vld [vmem:[#allocation7 + $0x20] sm:$0xf]
        %v359 = vld [vmem:[#allocation7 + $0x24] sm:$0xf]
        %v360 = vld [vmem:[#allocation7 + $0x28] sm:$0xf]
        %v361 = vld [vmem:[#allocation7 + $0x2c] sm:$0xf]
        %v362 = vld [vmem:[#allocation7 + $0x30] sm:$0xf]
        %v363 = vld [vmem:[#allocation7 + $0x34] sm:$0xf]
        %v364 = vld [vmem:[#allocation7 + $0x38] sm:$0xf]
        %v365 = vld [vmem:[#allocation7 + $0x3c] sm:$0xf]
        %v366 = vld [vmem:[%s6] sm:$0x1]
        %v367 = vlaneseq
        %v368 = vshrl.u32 %v367, 7
        %v369 = vsub.s32 0, %v368
        %v370 = vrot.slane %v366, %v369
        %v387 = vunpack.c.l.b16 %v350
        %v388 = vunpack.c.l.b16 %v351
        %v389 = vunpack.c.l.b16 %v352
        %v390 = vunpack.c.l.b16 %v353
        %v391 = vunpack.c.l.b16 %v354
        %v392 = vunpack.c.l.b16 %v355
        %v393 = vunpack.c.l.b16 %v356
        %v394 = vunpack.c.l.b16 %v357
        %v395 = vunpack.c.l.b16 %v358
        %v396 = vunpack.c.l.b16 %v359
        %v397 = vunpack.c.l.b16 %v360
        %v398 = vunpack.c.l.b16 %v361
        %v399 = vunpack.c.l.b16 %v362
        %v400 = vunpack.c.l.b16 %v363
        %v401 = vunpack.c.l.b16 %v364
        %v402 = vunpack.c.l.b16 %v365
        %v403 = vpack.c.b16 %v388, %v387
        %v404 = vpack.c.b16 %v390, %v389
        %v405 = vpack.c.b16 %v392, %v391
        %v406 = vpack.c.b16 %v394, %v393
        %v407 = vpack.c.b16 %v396, %v395
        %v408 = vpack.c.b16 %v398, %v397
        %v409 = vpack.c.b16 %v400, %v399
        %v410 = vpack.c.b16 %v402, %v401
        %419 = vmatprep.subr.bf16.mxu0 0
        %420 = vmatpush1.bf16.msra.mxu0 %v403
        %421 = vmatprep.subr.bf16.mxu0 0
        %422 = vmatpush1.bf16.msra.mxu0 %v404
        %423 = vmatprep.subr.bf16.mxu0 0
        %424 = vmatpush1.bf16.msra.mxu0 %v405
        %425 = vmatprep.subr.bf16.mxu0 0
        %426 = vmatpush1.bf16.msra.mxu0 %v406
        %427 = vmatprep.subr.bf16.mxu0 0
        %428 = vmatpush1.bf16.msra.mxu0 %v407
        %429 = vmatprep.subr.bf16.mxu0 0
        %430 = vmatpush1.bf16.msra.mxu0 %v408
        %431 = vmatprep.subr.bf16.mxu0 0
        %432 = vmatpush1.bf16.msra.mxu0 %v409
        %433 = vmatprep.subr.bf16.mxu0 0
        %434 = vmatpush1.bf16.msra.mxu0 %v410
        %435 = vmatprep.subr.bf16.mxu0 0
        %436 = vmatpush1.bf16.msra.mxu0 0
        %437 = vmatprep.subr.bf16.mxu0 0
        %438 = vmatpush1.bf16.msra.mxu0 0
        %439 = vmatprep.subr.bf16.mxu0 0
        %440 = vmatpush1.bf16.msra.mxu0 0
        %441 = vmatprep.subr.bf16.mxu0 0
        %442 = vmatpush1.bf16.msra.mxu0 0
        %443 = vmatprep.subr.bf16.mxu0 0
        %444 = vmatpush1.bf16.msra.mxu0 0
        %445 = vmatprep.subr.bf16.mxu0 0
        %446 = vmatpush1.bf16.msra.mxu0 0
        %447 = vmatprep.subr.bf16.mxu0 0
        %448 = vmatpush1.bf16.msra.mxu0 0
        %449 = vmatprep.subr.bf16.mxu0 0
        %450 = vmatpush1.bf16.msra.mxu0 0
        %451 = vmatprep.mubr.bf16.mxu0 0
        %452 = vmatmul.mubr.bf16.gmra.mrb[0].mxu0 %v349
        %v453 = vpop.f32.mrb[0].mxu0
        %v454 = vadd.f32 %v370, %v453
        %v455 = vpop.f32.mrb[0].mxu0
        %v456 = vpop.f32.mrb[0].mxu0
        %v457 = vpop.f32.mrb[0].mxu0
        %458 = vdwg.mxu0
        %v459 = vmax.f32 %v454, 0.0
        %v460 = vpack.c.bf16 %v459, %v459
        %v461 = vld [vmem:[#allocation9] sm:$0xf]
        %v462 = vld [vmem:[#allocation9 + $0x4] sm:$0xf]
        %v463 = vld [vmem:[#allocation9 + $0x8] sm:$0xf]
        %v464 = vld [vmem:[#allocation9 + $0xc] sm:$0xf]
        %v465 = vld [vmem:[#allocation9 + $0x10] sm:$0xf]
        %v466 = vld [vmem:[#allocation9 + $0x14] sm:$0xf]
        %v467 = vld [vmem:[#allocation9 + $0x18] sm:$0xf]
        %v468 = vld [vmem:[#allocation9 + $0x1c] sm:$0xf]
        %v469 = vld [vmem:[#allocation9 + $0x20] sm:$0xf]
        %v470 = vld [vmem:[#allocation9 + $0x24] sm:$0xf]
        %v471 = vld [vmem:[#allocation9 + $0x28] sm:$0xf]
        %v472 = vld [vmem:[#allocation9 + $0x2c] sm:$0xf]
        %v473 = vld [vmem:[#allocation9 + $0x30] sm:$0xf]
        %v474 = vld [vmem:[#allocation9 + $0x34] sm:$0xf]
        %v475 = vld [vmem:[#allocation9 + $0x38] sm:$0xf]
        %v476 = vld [vmem:[#allocation9 + $0x3c] sm:$0xf]
        %v477 = vld [vmem:[%s6 + $0x1] sm:$0x1]
        %v478 = vlaneseq
        %v479 = vshrl.u32 %v478, 7
        %v480 = vsub.s32 0, %v479
        %v481 = vrot.slane %v477, %v480
        %v498 = vunpack.c.l.b16 %v461
        %v499 = vunpack.c.l.b16 %v462
        %v500 = vunpack.c.l.b16 %v463
        %v501 = vunpack.c.l.b16 %v464
        %v502 = vunpack.c.l.b16 %v465
        %v503 = vunpack.c.l.b16 %v466
        %v504 = vunpack.c.l.b16 %v467
        %v505 = vunpack.c.l.b16 %v468
        %v506 = vunpack.c.l.b16 %v469
        %v507 = vunpack.c.l.b16 %v470
        %v508 = vunpack.c.l.b16 %v471
        %v509 = vunpack.c.l.b16 %v472
        %v510 = vunpack.c.l.b16 %v473
        %v511 = vunpack.c.l.b16 %v474
        %v512 = vunpack.c.l.b16 %v475
        %v513 = vunpack.c.l.b16 %v476
        %v514 = vpack.c.b16 %v499, %v498
        %v515 = vpack.c.b16 %v501, %v500
        %v516 = vpack.c.b16 %v503, %v502
        %v517 = vpack.c.b16 %v505, %v504
        %v518 = vpack.c.b16 %v507, %v506
        %v519 = vpack.c.b16 %v509, %v508
        %v520 = vpack.c.b16 %v511, %v510
        %v521 = vpack.c.b16 %v513, %v512
        %530 = vmatprep.subr.bf16.mxu0 0
        %531 = vmatpush1.bf16.msra.mxu0 %v514
        %532 = vmatprep.subr.bf16.mxu0 0
        %533 = vmatpush1.bf16.msra.mxu0 %v515
        %534 = vmatprep.subr.bf16.mxu0 0
        %535 = vmatpush1.bf16.msra.mxu0 %v516
        %536 = vmatprep.subr.bf16.mxu0 0
        %537 = vmatpush1.bf16.msra.mxu0 %v517
        %538 = vmatprep.subr.bf16.mxu0 0
        %539 = vmatpush1.bf16.msra.mxu0 %v518
        %540 = vmatprep.subr.bf16.mxu0 0
        %541 = vmatpush1.bf16.msra.mxu0 %v519
        %542 = vmatprep.subr.bf16.mxu0 0
        %543 = vmatpush1.bf16.msra.mxu0 %v520
        %544 = vmatprep.subr.bf16.mxu0 0
        %545 = vmatpush1.bf16.msra.mxu0 %v521
        %546 = vmatprep.subr.bf16.mxu0 0
        %547 = vmatpush1.bf16.msra.mxu0 0
        %548 = vmatprep.subr.bf16.mxu0 0
        %549 = vmatpush1.bf16.msra.mxu0 0
        %550 = vmatprep.subr.bf16.mxu0 0
        %551 = vmatpush1.bf16.msra.mxu0 0
        %552 = vmatprep.subr.bf16.mxu0 0
        %553 = vmatpush1.bf16.msra.mxu0 0
        %554 = vmatprep.subr.bf16.mxu0 0
        %555 = vmatpush1.bf16.msra.mxu0 0
        %556 = vmatprep.subr.bf16.mxu0 0
        %557 = vmatpush1.bf16.msra.mxu0 0
        %558 = vmatprep.subr.bf16.mxu0 0
        %559 = vmatpush1.bf16.msra.mxu0 0
        %560 = vmatprep.subr.bf16.mxu0 0
        %561 = vmatpush1.bf16.msra.mxu0 0
        %562 = vmatprep.mubr.bf16.mxu0 0
        %563 = vmatmul.mubr.bf16.gmra.mrb[0].mxu0 %v460
        %v564 = vpop.f32.mrb[0].mxu0
        %v565 = vadd.f32 %v481, %v564
        %v566 = vpop.f32.mrb[0].mxu0
        %v567 = vpop.f32.mrb[0].mxu0
        %v568 = vpop.f32.mrb[0].mxu0
        %569 = vdwg.mxu0
        %v570 = vmax.f32 %v565, 0.0
        %v571 = vpack.c.bf16 %v570, %v570
        %v572 = vld [vmem:[#allocation10] sm:$0xf]
        %v573 = vld [vmem:[#allocation10 + $0x4] sm:$0xf]
        %v574 = vld [vmem:[#allocation10 + $0x8] sm:$0xf]
        %v575 = vld [vmem:[#allocation10 + $0xc] sm:$0xf]
        %v576 = vld [vmem:[#allocation10 + $0x10] sm:$0xf]
        %v577 = vld [vmem:[#allocation10 + $0x14] sm:$0xf]
        %v578 = vld [vmem:[#allocation10 + $0x18] sm:$0xf]
        %v579 = vld [vmem:[#allocation10 + $0x1c] sm:$0xf]
        %v580 = vld [vmem:[#allocation10 + $0x20] sm:$0xf]
        %v581 = vld [vmem:[#allocation10 + $0x24] sm:$0xf]
        %v582 = vld [vmem:[#allocation10 + $0x28] sm:$0xf]
        %v583 = vld [vmem:[#allocation10 + $0x2c] sm:$0xf]
        %v584 = vld [vmem:[#allocation10 + $0x30] sm:$0xf]
        %v585 = vld [vmem:[#allocation10 + $0x34] sm:$0xf]
        %v586 = vld [vmem:[#allocation10 + $0x38] sm:$0xf]
        %v587 = vld [vmem:[#allocation10 + $0x3c] sm:$0xf]
        %v588 = vld [vmem:[%s6 + $0x2] sm:$0x1]
        %v589 = vlaneseq
        %v590 = vshrl.u32 %v589, 7
        %v591 = vsub.s32 0, %v590
        %v592 = vrot.slane %v588, %v591
        %v609 = vunpack.c.l.b16 %v572
        %v610 = vunpack.c.l.b16 %v573
        %v611 = vunpack.c.l.b16 %v574
        %v612 = vunpack.c.l.b16 %v575
        %v613 = vunpack.c.l.b16 %v576
        %v614 = vunpack.c.l.b16 %v577
        %v615 = vunpack.c.l.b16 %v578
        %v616 = vunpack.c.l.b16 %v579
        %v617 = vunpack.c.l.b16 %v580
        %v618 = vunpack.c.l.b16 %v581
        %v619 = vunpack.c.l.b16 %v582
        %v620 = vunpack.c.l.b16 %v583
        %v621 = vunpack.c.l.b16 %v584
        %v622 = vunpack.c.l.b16 %v585
        %v623 = vunpack.c.l.b16 %v586
        %v624 = vunpack.c.l.b16 %v587
        %v625 = vpack.c.b16 %v610, %v609
        %v626 = vpack.c.b16 %v612, %v611
        %v627 = vpack.c.b16 %v614, %v613
        %v628 = vpack.c.b16 %v616, %v615
        %v629 = vpack.c.b16 %v618, %v617
        %v630 = vpack.c.b16 %v620, %v619
        %v631 = vpack.c.b16 %v622, %v621
        %v632 = vpack.c.b16 %v624, %v623
        %641 = vmatprep.subr.bf16.mxu0 0
        %642 = vmatpush1.bf16.msra.mxu0 %v625
        %643 = vmatprep.subr.bf16.mxu0 0
        %644 = vmatpush1.bf16.msra.mxu0 %v626
        %645 = vmatprep.subr.bf16.mxu0 0
        %646 = vmatpush1.bf16.msra.mxu0 %v627
        %647 = vmatprep.subr.bf16.mxu0 0
        %648 = vmatpush1.bf16.msra.mxu0 %v628
        %649 = vmatprep.subr.bf16.mxu0 0
        %650 = vmatpush1.bf16.msra.mxu0 %v629
        %651 = vmatprep.subr.bf16.mxu0 0
        %652 = vmatpush1.bf16.msra.mxu0 %v630
        %653 = vmatprep.subr.bf16.mxu0 0
        %654 = vmatpush1.bf16.msra.mxu0 %v631
        %655 = vmatprep.subr.bf16.mxu0 0
        %656 = vmatpush1.bf16.msra.mxu0 %v632
        %657 = vmatprep.subr.bf16.mxu0 0
        %658 = vmatpush1.bf16.msra.mxu0 0
        %659 = vmatprep.subr.bf16.mxu0 0
        %660 = vmatpush1.bf16.msra.mxu0 0
        %661 = vmatprep.subr.bf16.mxu0 0
        %662 = vmatpush1.bf16.msra.mxu0 0
        %663 = vmatprep.subr.bf16.mxu0 0
        %664 = vmatpush1.bf16.msra.mxu0 0
        %665 = vmatprep.subr.bf16.mxu0 0
        %666 = vmatpush1.bf16.msra.mxu0 0
        %667 = vmatprep.subr.bf16.mxu0 0
        %668 = vmatpush1.bf16.msra.mxu0 0
        %669 = vmatprep.subr.bf16.mxu0 0
        %670 = vmatpush1.bf16.msra.mxu0 0
        %671 = vmatprep.subr.bf16.mxu0 0
        %672 = vmatpush1.bf16.msra.mxu0 0
        %673 = vmatprep.mubr.bf16.mxu0 0
        %674 = vmatmul.mubr.bf16.gmra.mrb[0].mxu0 %v571
        %v675 = vpop.f32.mrb[0].mxu0
        %v676 = vadd.f32 %v592, %v675
        %v677 = vpop.f32.mrb[0].mxu0
        %v678 = vpop.f32.mrb[0].mxu0
        %v679 = vpop.f32.mrb[0].mxu0
        %680 = vdwg.mxu0
        %v681 = vmax.f32 %v676, 0.0
        %v682 = vpack.c.bf16 %v681, %v681
        %v683 = vld [vmem:[#allocation12] sm:$0xf]
        %v684 = vld [vmem:[#allocation12 + $0x4] sm:$0xf]
        %v685 = vld [vmem:[#allocation12 + $0x8] sm:$0xf]
        %v686 = vld [vmem:[#allocation12 + $0xc] sm:$0xf]
        %v687 = vld [vmem:[#allocation12 + $0x10] sm:$0xf]
        %v688 = vld [vmem:[#allocation12 + $0x14] sm:$0xf]
        %v689 = vld [vmem:[#allocation12 + $0x18] sm:$0xf]
        %v690 = vld [vmem:[#allocation12 + $0x1c] sm:$0xf]
        %v691 = vld [vmem:[#allocation12 + $0x20] sm:$0xf]
        %v692 = vld [vmem:[#allocation12 + $0x24] sm:$0xf]
        %v693 = vld [vmem:[#allocation12 + $0x28] sm:$0xf]
        %v694 = vld [vmem:[#allocation12 + $0x2c] sm:$0xf]
        %v695 = vld [vmem:[#allocation12 + $0x30] sm:$0xf]
        %v696 = vld [vmem:[#allocation12 + $0x34] sm:$0xf]
        %v697 = vld [vmem:[#allocation12 + $0x38] sm:$0xf]
        %v698 = vld [vmem:[#allocation12 + $0x3c] sm:$0xf]
        %v699 = vld [vmem:[%s6 + $0x3] sm:$0x1]
        %v700 = vlaneseq
        %v701 = vshrl.u32 %v700, 7
        %v702 = vsub.s32 0, %v701
        %v703 = vrot.slane %v699, %v702
        %v720 = vunpack.c.l.b16 %v683
        %v721 = vunpack.c.l.b16 %v684
        %v722 = vunpack.c.l.b16 %v685
        %v723 = vunpack.c.l.b16 %v686
        %v724 = vunpack.c.l.b16 %v687
        %v725 = vunpack.c.l.b16 %v688
        %v726 = vunpack.c.l.b16 %v689
        %v727 = vunpack.c.l.b16 %v690
        %v728 = vunpack.c.l.b16 %v691
        %v729 = vunpack.c.l.b16 %v692
        %v730 = vunpack.c.l.b16 %v693
        %v731 = vunpack.c.l.b16 %v694
        %v732 = vunpack.c.l.b16 %v695
        %v733 = vunpack.c.l.b16 %v696
        %v734 = vunpack.c.l.b16 %v697
        %v735 = vunpack.c.l.b16 %v698
        %v736 = vpack.c.b16 %v721, %v720
        %v737 = vpack.c.b16 %v723, %v722
        %v738 = vpack.c.b16 %v725, %v724
        %v739 = vpack.c.b16 %v727, %v726
        %v740 = vpack.c.b16 %v729, %v728
        %v741 = vpack.c.b16 %v731, %v730
        %v742 = vpack.c.b16 %v733, %v732
        %v743 = vpack.c.b16 %v735, %v734
        %752 = vmatprep.subr.bf16.mxu0 0
        %753 = vmatpush1.bf16.msra.mxu0 %v736
        %754 = vmatprep.subr.bf16.mxu0 0
        %755 = vmatpush1.bf16.msra.mxu0 %v737
        %756 = vmatprep.subr.bf16.mxu0 0
        %757 = vmatpush1.bf16.msra.mxu0 %v738
        %758 = vmatprep.subr.bf16.mxu0 0
        %759 = vmatpush1.bf16.msra.mxu0 %v739
        %760 = vmatprep.subr.bf16.mxu0 0
        %761 = vmatpush1.bf16.msra.mxu0 %v740
        %762 = vmatprep.subr.bf16.mxu0 0
        %763 = vmatpush1.bf16.msra.mxu0 %v741
        %764 = vmatprep.subr.bf16.mxu0 0
        %765 = vmatpush1.bf16.msra.mxu0 %v742
        %766 = vmatprep.subr.bf16.mxu0 0
        %767 = vmatpush1.bf16.msra.mxu0 %v743
        %768 = vmatprep.subr.bf16.mxu0 0
        %769 = vmatpush1.bf16.msra.mxu0 0
        %770 = vmatprep.subr.bf16.mxu0 0
        %771 = vmatpush1.bf16.msra.mxu0 0
        %772 = vmatprep.subr.bf16.mxu0 0
        %773 = vmatpush1.bf16.msra.mxu0 0
        %774 = vmatprep.subr.bf16.mxu0 0
        %775 = vmatpush1.bf16.msra.mxu0 0
        %776 = vmatprep.subr.bf16.mxu0 0
        %777 = vmatpush1.bf16.msra.mxu0 0
        %778 = vmatprep.subr.bf16.mxu0 0
        %779 = vmatpush1.bf16.msra.mxu0 0
        %780 = vmatprep.subr.bf16.mxu0 0
        %781 = vmatpush1.bf16.msra.mxu0 0
        %782 = vmatprep.subr.bf16.mxu0 0
        %783 = vmatpush1.bf16.msra.mxu0 0
        %784 = vmatprep.mubr.bf16.mxu0 0
        %785 = vmatmul.mubr.bf16.gmra.mrb[0].mxu0 %v682
        %v786 = vpop.f32.mrb[0].mxu0
        %v787 = vadd.f32 %v703, %v786
        %v788 = vpop.f32.mrb[0].mxu0
        %v789 = vpop.f32.mrb[0].mxu0
        %v790 = vpop.f32.mrb[0].mxu0
        %791 = vdwg.mxu0
        %v792 = vmax.f32 %v787, 0.0
        %s793 = smul.u32 %s35, 8
        %v794 = vlaneseq
        %v795 = vshrl.u32 %v794, 7
        %v796 = vstv %s793
        %v797 = vadd.s32 %v796, %v795
        %s798 = sld [smem:[#allocation3 + %s34]]
        %v799 = vstv %s798
        %vm800 = vcmp.lt.s32.totalorder %v797, %v799
        %v801 = vsel %vm800, 1, 0
        %vm802 = vcmp.eq.s32.totalorder %v801, 1
        %v803 = vsel %vm802, %v792, 0.0
        %vm804 = vcmask 261120
        %805 = vst.msk [vmem:[%s346] sm:$0xff] %vm804, %v803
        %s806 = sand.u32 %s185, 1
        %s807 = scalar_lea.sflag [#allocation6], %s806
        %s808 = sand.u32 %s185, 1
        %s809 = smul.addr %s808, 8
        %s810 = scalar_lea.vmem [#allocation13], %s809
        // Predicated region
        $region65: #{tpu_custom_call.1} parent=43 // pred_check
          %p811 = pneg %p195
        $region66: #{tpu_custom_call.1} parent=43 // pred_check_branch
          %813 = sbr.rel (%p811) target = $region68
        $region67: #{tpu_custom_call.1} parent=43 // pred_region
          %s815 = ssub.s32 128, 128
          %816 = vsyncadd %s807, %s815
          %s817 = sadd.s32 %s35, %s34
          %s818 = smul.addr %s817, 128
          %s819 = scalar_lea.hbm %s7, %s818
          %s821 = sshll.u32 %s810, 4
          %s822 = int_to_ptr.vmem [resolvable:$true] %s821
          %824 = dma.vmem_to_hbm [thread:$0]  %s822, 128, %s819, %s807
        $region68: #{tpu_custom_call.1} parent=43 // pred_fallthru
          _
      $region44: #{tpu_custom_call.1} parent=5 // pred_fallthru
        _
      %p825 = scmp.le.s32.totalorder 2, %s25
      // Predicated region
      $region69: #{tpu_custom_call.1} parent=5 // pred_check
        %p826 = pneg %p825
      $region70: #{tpu_custom_call.1} parent=5 // pred_check_branch
        %828 = sbr.rel (%p826) target = $region72
      $region71: #{tpu_custom_call.1} parent=5 // pred_region
        %s829 = ssub.s32 %s25, 2
        // Predicated region
        $region73: #{tpu_custom_call.1} parent=71 // pred_check
          %p830 = pneg %p201
        $region74: #{tpu_custom_call.1} parent=71 // pred_check_branch
          %832 = sbr.rel (%p830) target = $region76
        $region75: #{tpu_custom_call.1} parent=71 // pred_region
          %s833 = sand.u32 %s186, 1
          %s834 = scalar_lea.sflag [#allocation6], %s833
          %s835 = sand.u32 %s186, 1
          %s836 = smul.addr %s835, 8
          %s837 = scalar_lea.vmem [#allocation13], %s836
          %838 = dma.done %s834, 128
        $region76: #{tpu_custom_call.1} parent=71 // pred_fallthru
          _
      $region72: #{tpu_custom_call.1} parent=5 // pred_fallthru
        _
    $region6: #{tpu_custom_call.1} parent=1 // loop_footer
      %s29 = sadd.s32 1, %s25
    $region7: #{tpu_custom_call.1} parent=1 // loop_footer_branch
      %24 = sbr.rel target = $region3
    $region8: #{tpu_custom_call.1} parent=1 // loop_exit
      _
    %839 = vsyncpa [#allocation5], 1
    %s840 = scalar_lea.sflag [#allocation5], 1
    %841 = vsyncpa %s840, 1
    %842 = vsyncpa [#allocation8], 1
    %843 = vsyncpa [#allocation11], 1
    %844 = vsyncpa [#allocation6], 1
    %s845 = scalar_lea.sflag [#allocation6], 1
    %846 = vsyncpa %s845, 1

</llo_original>
